<compile_context>
chip_gen: v5e
topology: v5e:2x2
jax: 0.10.0
libtpu: 0.0.40
codegen_flags: <defaults>
</compile_context>

<pallas_src>
import math

import jax
import jax.numpy as jnp
from jax import lax
from jax.experimental import pallas as pl
from jax.experimental.pallas import tpu as pltpu


def _round_up(x: int, m: int) -> int:
    return ((x + m - 1) // m) * m


# --------------------- Pallas kernel: tiled matmul + bias (target features) ---
def _matmul_bias_kernel(x_ref, w_ref, b_ref, o_ref):
    o_ref[...] = (
        jnp.dot(x_ref[...], w_ref[...], preferred_element_type=jnp.float32)
        + b_ref[...]
    ).astype(o_ref.dtype)


def matmul_bias(x, w, b, *, tm=512):
    """y = x @ w + b;  x:(M,K)  w:(K,N)  b:(N,).  M-tiled, K/N kept whole."""
    M, K = x.shape
    N = w.shape[1]
    tm = min(tm, _round_up(M, 8))
    Mp = _round_up(M, tm)
    if Mp != M:
        x = jnp.pad(x, ((0, Mp - M), (0, 0)))
    out = pl.pallas_call(
        _matmul_bias_kernel,
        out_shape=jax.ShapeDtypeStruct((Mp, N), x.dtype),
        grid=(Mp // tm,),
        in_specs=[
            pl.BlockSpec((tm, K), lambda i: (i, 0)),
            pl.BlockSpec((K, N), lambda i: (0, 0)),
            pl.BlockSpec((1, N), lambda i: (0, 0)),
        ],
        out_specs=pl.BlockSpec((tm, N), lambda i: (i, 0)),
        compiler_params=pltpu.CompilerParams(dimension_semantics=("parallel",)),
    )(x, w, b.reshape(1, N))
    return out[:M]


# --------------------- GRU recurrence (shared by dec / enc kernel variants) ---
def _gru_recurrence(x_ref, wf_ref, bf_ref, ucat_ref, bhn_ref,
                    xp_scr, h_scr, hid_out_ref):
    t_id = pl.program_id(1)

    @pl.when(t_id == 0)
    def _():
        h_scr[...] = jnp.zeros_like(h_scr)

    Tt, Bb, Draw = x_ref.shape
    Hp = h_scr.shape[1]

    # Fused (feature-extractor + GRU input projection) for the whole tile:
    # one big MXU matmul, bf16 operands, f32 accumulate, biases folded.
    x2 = x_ref[...].reshape(Tt * Bb, Draw)
    xp = (jnp.dot(x2.astype(jnp.bfloat16), wf_ref[...].astype(jnp.bfloat16),
                  preferred_element_type=jnp.float32) + bf_ref[...])
    xp_scr[...] = xp.reshape(Tt, Bb, 3 * Hp)

    ucat = ucat_ref[...]                                     # (Hp, 3Hp) f32
    bhn_b = jnp.broadcast_to(bhn_ref[...], (Bb, Hp))         # hoisted broadcast

    def step(t, h):
        # Recurrent dot kept in f32 to preserve PyTorch-f32 recurrence numerics.
        hu = jnp.dot(h, ucat, preferred_element_type=jnp.float32)   # (Bb, 3Hp)
        g = xp_scr[t]                                                # (Bb, 3Hp)
        r = jax.nn.sigmoid(g[:, :Hp] + hu[:, :Hp])
        z = jax.nn.sigmoid(g[:, Hp:2 * Hp] + hu[:, Hp:2 * Hp])
        n = jnp.tanh(g[:, 2 * Hp:] + r * (hu[:, 2 * Hp:] + bhn_b))
        h_new = (1.0 - z) * n + z * h
        hid_out_ref[t] = h_new.astype(hid_out_ref.dtype)
        return h_new                                         # h stays in vregs

    h_final = lax.fori_loop(0, Tt, step, h_scr[...], unroll=4)
    h_scr[...] = h_final                                     # cross-tile carry


def _gru_dec_kernel(x_ref, wf_ref, bf_ref, ucat_ref, bhn_ref, wdec_ref, bdec_ref,
                    dec_ref, xp_scr, h_scr, hid_scr):
    _gru_recurrence(x_ref, wf_ref, bf_ref, ucat_ref, bhn_ref,
                    xp_scr, h_scr, hid_scr)
    Tt, Bb, Hp = hid_scr.shape
    # Fused decoder (kernel_size=1 Conv1d): one matmul over the whole tile.
    hid = hid_scr[...].reshape(Tt * Bb, Hp)
    dec = (jnp.dot(hid.astype(jnp.bfloat16), wdec_ref[...].astype(jnp.bfloat16),
                   preferred_element_type=jnp.float32) + bdec_ref[...])
    dec_ref[...] = dec.reshape(Tt, Bb, -1).astype(dec_ref.dtype)


def _gru_enc_kernel(x_ref, wf_ref, bf_ref, ucat_ref, bhn_ref,
                    enc_ref, xp_scr, h_scr):
    _gru_recurrence(x_ref, wf_ref, bf_ref, ucat_ref, bhn_ref,
                    xp_scr, h_scr, enc_ref)


def _gru_run(x_tm, p, extract_features):
    """x_tm:(T'',B,Draw) time-major raw frames -> dec:(B,T'',Od) or enc:(B,T'',H).

    TODO(synk): `lengths` is ignored inside the recurrence (plain padded-batch
    nn.GRU semantics, no pack_padded_sequence masking).
    """
    Tpp, B, Draw = x_tm.shape
    H, Hp = p["H"], p["Hp"]
    Od = p["W_dec_p"].shape[1]

    B_BLK = min(64, _round_up(B, 8))
    Bp = _round_up(B, B_BLK)
    T_TILE = min(128, _round_up(Tpp, 8))
    Tpad = _round_up(Tpp, T_TILE)

    x_tm = jnp.pad(x_tm, ((0, Tpad - Tpp), (0, Bp - B), (0, 0)))

    grid = (Bp // B_BLK, Tpad // T_TILE)
    x_spec = pl.BlockSpec((T_TILE, B_BLK, Draw), lambda b, t: (t, b, 0))
    weight_specs = [
        pl.BlockSpec((Draw, 3 * Hp), lambda b, t: (0, 0)),
        pl.BlockSpec((1, 3 * Hp), lambda b, t: (0, 0)),
        pl.BlockSpec((Hp, 3 * Hp), lambda b, t: (0, 0)),
        pl.BlockSpec((1, Hp), lambda b, t: (0, 0)),
    ]
    common_scratch = [
        pltpu.VMEM((T_TILE, B_BLK, 3 * Hp), jnp.float32),   # projected inputs
        pltpu.VMEM((B_BLK, Hp), jnp.float32),               # carried h state
    ]
    cp = pltpu.CompilerParams(
        dimension_semantics=("parallel", "arbitrary"),
        vmem_limit_bytes=48 * 1024 * 1024)

    if extract_features:
        enc_tm = pl.pallas_call(
            _gru_enc_kernel,
            out_shape=jax.ShapeDtypeStruct((Tpad, Bp, Hp), x_tm.dtype),
            grid=grid,
            in_specs=[x_spec] + weight_specs,
            out_specs=pl.BlockSpec((T_TILE, B_BLK, Hp), lambda b, t: (t, b, 0)),
            scratch_shapes=common_scratch,
            compiler_params=cp,
        )(x_tm, p["W_fused"], p["b_fused"], p["U_cat"], p["b_hn_p"])
        return jnp.transpose(enc_tm[:Tpp, :B, :H], (1, 0, 2))

    dec_tm = pl.pallas_call(
        _gru_dec_kernel,
        out_shape=jax.ShapeDtypeStruct((Tpad, Bp, Od), x_tm.dtype),
        grid=grid,
        in_specs=[x_spec] + weight_specs + [
            pl.BlockSpec((Hp, Od), lambda b, t: (0, 0)),
            pl.BlockSpec((1, Od), lambda b, t: (0, 0)),
        ],
        out_specs=pl.BlockSpec((T_TILE, B_BLK, Od), lambda b, t: (t, b, 0)),
        scratch_shapes=common_scratch
        + [pltpu.VMEM((T_TILE, B_BLK, Hp), jnp.float32)],    # tile hidden states
        compiler_params=cp,
    )(x_tm, p["W_fused"], p["b_fused"], p["U_cat"], p["b_hn_p"],
      p["W_dec_p"], p["b_dec_p"])
    return jnp.transpose(dec_tm[:Tpp, :B, :], (1, 0, 2))


# --------------------- framing & explicit feature extraction (target path) ----
def _frames_batch_major(x_bct, frame):
    """(B,C,T) -> (B,T',C*frame) raw frames (mirrors conv framing + 4-D branch)."""
    B, C, T = x_bct.shape
    Tp = T // frame
    xf = x_bct[..., : Tp * frame].reshape(B, C, Tp, frame)
    return jnp.transpose(xf, (0, 2, 1, 3)).reshape(B, Tp, C * frame)


def feature_extract(frames_bm, p):
    """(B,T',C*frame) raw frames -> (B,T',C*F) features (block-diag linear)."""
    B, Tp, Draw = frames_bm.shape
    feats = matmul_bias(frames_bm.reshape(B * Tp, Draw), p["W_fe_bd"], p["b_fe_rep"])
    return feats.reshape(B, Tp, -1)


# --------------------- MultichannelAPC forward --------------------------------
def multichannel_apc_forward(params, x, lengths, target=None, time_shift=3,
                             extract_features=False):
    B, C, T = x.shape
    init_length = T
    frame = params["frame"]
    Tp = T // frame

    # Framing of the raw input; feature_extractor is linear and folded into the
    # GRU input projection for the encoder path (exact composition).
    frames_x = _frames_batch_major(x, frame)                  # (B, T', C*frame)

    if target is not None:
        tgt_feats = feature_extract(_frames_batch_major(target, frame), params)
    else:
        tgt_feats = feature_extract(frames_x, params)         # deepcopy(x) path

    extra = init_length % Tp
    if extra > 0:
        lengths = lengths - extra
    lengths = lengths // (init_length // Tp)

    # feature_projection = Identity; feature_dropout(p=0.0) = identity.
    if time_shift > 0:                                        # guard time_shift==0
        x_frames = frames_x[:, :-time_shift]
        tgt_feats = tgt_feats[:, time_shift:]
    else:
        x_frames = frames_x
    lengths = lengths - time_shift

    x_tm = jnp.transpose(x_frames, (1, 0, 2))                 # time-major for GRU
    if extract_features:
        return _gru_run(x_tm, params, True)
    dec = _gru_run(x_tm, params, False)
    return dec, tgt_feats, lengths


# --------------------- deterministic parameter init ---------------------------
def init_params(key, *, C, frame, F_feat, H, output_dim):
    D = C * F_feat
    ks = jax.random.split(key, 14)
    s_fe = 1.0 / math.sqrt(frame)
    s_h = 1.0 / math.sqrt(H)

    def u(k, shape, s):
        return jax.random.uniform(k, shape, jnp.float32, -s, s)

    return {
        "frame": frame, "C": C,
        "W_fe": u(ks[0], (frame, F_feat), s_fe),
        "b_fe": u(ks[1], (F_feat,), s_fe),
        "Wr": u(ks[2], (D, H), s_h), "Wz": u(ks[3], (D, H), s_h), "Wn": u(ks[4], (D, H), s_h),
        "Ur": u(ks[5], (H, H), s_h), "Uz": u(ks[6], (H, H), s_h), "Un": u(ks[7], (H, H), s_h),
        "br": u(ks[8], (1, H), s_h), "bz": u(ks[9], (1, H), s_h),
        "bin": u(ks[10], (1, H), s_h), "bhn": u(ks[11], (1, H), s_h),
        "W_dec": u(ks[12], (H, output_dim), s_h),
        "b_dec": u(ks[13], (output_dim,), s_h),
    }


def pack_params(p):
    """Concatenate r|z|n weights, zero-pad H -> 128 lanes, fuse the linear
    feature extractor into the GRU input projection (exact composition), and
    build the block-diagonal extractor for the target path."""
    H = p["Ur"].shape[0]
    D = p["Wr"].shape[0]               # C * F
    F_feat = p["W_fe"].shape[1]
    C = p["C"]
    frame = p["frame"]
    Od = p["W_dec"].shape[1]
    Hp = _round_up(H, 128)

    def pad_c(w):                      # pad gate columns H -> Hp
        return jnp.pad(w, ((0, 0), (0, Hp - H)))

    def pad_rc(w):                     # pad rows and columns H -> Hp
        return jnp.pad(w, ((0, Hp - H), (0, Hp - H)))

    W_cat = jnp.concatenate([pad_c(p["Wr"]), pad_c(p["Wz"]), pad_c(p["Wn"])], axis=1)
    U_cat = jnp.concatenate([pad_rc(p["Ur"]), pad_rc(p["Uz"]), pad_rc(p["Un"])], axis=1)
    b_cat = jnp.concatenate([pad_c(p["br"]), pad_c(p["bz"]), pad_c(p["bin"])], axis=1)
    b_hn_p = pad_c(p["bhn"])

    # Block-diagonal feature-extractor weight: (C*frame, C*F).
    W_fe_bd = jnp.kron(jnp.eye(C, dtype=jnp.float32), p["W_fe"])
    b_fe_rep = jnp.tile(p["b_fe"], C)                         # (C*F,)

    # Fuse extractor into the GRU input projection (both linear -> exact).
    W_fused = W_fe_bd @ W_cat                                 # (C*frame, 3Hp)
    b_fused = b_cat + b_fe_rep.reshape(1, D) @ W_cat          # (1, 3Hp)

    W_dec_p = jnp.pad(p["W_dec"], ((0, Hp - H), (0, 0)))      # (Hp, Od)
    b_dec_p = p["b_dec"].reshape(1, Od)

    return {
        "frame": frame, "H": H, "Hp": Hp,
        "W_fe_bd": W_fe_bd, "b_fe_rep": b_fe_rep,
        "W_fused": W_fused, "b_fused": b_fused,
        "U_cat": U_cat, "b_hn_p": b_hn_p,
        "W_dec_p": W_dec_p, "b_dec_p": b_dec_p,
    }


if __name__ == "__main__":
    B, C, T = 2, 4, 64          # batch, channels, raw time samples
    frame, F_feat = 8, 8        # feature-extractor frame size / feature dim
    H = 32                      # encoder_embedding_dim
    input_dim = C * F_feat      # 32 -> output_dim defaults to input_dim
    time_shift = 3

    key = jax.random.PRNGKey(0)
    k_x, k_p = jax.random.split(key)
    x = jax.random.normal(k_x, (B, C, T), jnp.float32)
    lengths = jnp.full((B,), T, dtype=jnp.int32)
    raw_params = init_params(k_p, C=C, frame=frame, F_feat=F_feat, H=H,
                             output_dim=input_dim)
    params = pack_params(raw_params)

    y, target, out_lengths = multichannel_apc_forward(
        params, x, lengths, target=None, time_shift=time_shift)
    jax.block_until_ready((y, target, out_lengths))

    feats = multichannel_apc_forward(
        params, x, lengths, target=None, time_shift=time_shift,
        extract_features=True)
    jax.block_until_ready(feats)

    Tpp = T // frame - time_shift
    assert y.shape == (B, Tpp, input_dim)
    assert target.shape == (B, Tpp, input_dim)
    assert out_lengths.shape == (B,)
    assert feats.shape == (B, Tpp, H)
    print("KERNEL_OK")
</pallas_src>

<mosaic_0001>
module attributes {stable_mosaic.version = 11 : i64} {
  func.func @_matmul_bias_kernel(%arg0: i32, %arg1: memref<16x32xf32, #tpu.memory_space<vmem>>, %arg2: memref<32x32xf32, #tpu.memory_space<vmem>>, %arg3: memref<1x32xf32, #tpu.memory_space<vmem>>, %arg4: memref<16x32xf32, #tpu.memory_space<vmem>>) attributes {dimension_semantics = [#tpu.dimension_semantics<parallel>], iteration_bounds = array<i64: 1>, scalar_prefetch = 0 : i64, scratch_operands = 0 : i64, tpu.core_type = #tpu.core_type<tc>, window_params = [{transform_indices = @transform_0, window_bounds = array<i64: 16, 32>}, {pipeline_mode = #tpu.pipeline_mode<synchronous>, transform_indices = @transform_1, window_bounds = array<i64: 32, 32>}, {pipeline_mode = #tpu.pipeline_mode<synchronous>, transform_indices = @transform_2, window_bounds = array<i64: 1, 32>}, {transform_indices = @transform_3, window_bounds = array<i64: 16, 32>}]} {
    %c0 = arith.constant 0 : index
    %c0_0 = arith.constant 0 : index
    %0 = vector.load %arg1[%c0, %c0_0] : memref<16x32xf32, #tpu.memory_space<vmem>>, vector<16x32xf32>
    %c0_1 = arith.constant 0 : index
    %c0_2 = arith.constant 0 : index
    %1 = vector.load %arg2[%c0_1, %c0_2] : memref<32x32xf32, #tpu.memory_space<vmem>>, vector<32x32xf32>
    %cst = arith.constant dense<0.000000e+00> : vector<16x32xf32>
    %2 = tpu.matmul %0, %1, %cst {dimension_numbers = #tpu.dot_dimension_numbers<[1], [0], [0], [1], [0, 0, 1, 1], [], []>} : vector<16x32xf32>, vector<32x32xf32>, vector<16x32xf32> -> vector<16x32xf32>
    %c0_3 = arith.constant 0 : index
    %c0_4 = arith.constant 0 : index
    %3 = vector.load %arg3[%c0_3, %c0_4] : memref<1x32xf32, #tpu.memory_space<vmem>>, vector<1x32xf32>
    %4 = vector.broadcast %3 : vector<1x32xf32> to vector<16x32xf32>
    %5 = arith.addf %2, %4 : vector<16x32xf32>
    %c0_5 = arith.constant 0 : index
    %c0_6 = arith.constant 0 : index
    %6 = vector.load %arg4[%c0_5, %c0_6] : memref<16x32xf32, #tpu.memory_space<vmem>>, vector<16x32xf32>
    tpu.vector_store %arg4[%c0_5, %c0_6], %5 {strides = array<i32>} : memref<16x32xf32, #tpu.memory_space<vmem>>, vector<16x32xf32>,
    return
  }
  func.func @transform_0(%arg0: i32) -> (i32, i32) {
    %c0_i32 = arith.constant 0 : i32
    %c0_i32_0 = arith.constant 0 : i32
    return %arg0, %c0_i32 : i32, i32
  }
  func.func @transform_1(%arg0: i32) -> (i32, i32) {
    %c0_i32 = arith.constant 0 : i32
    %c0_i32_0 = arith.constant 0 : i32
    %c0_i32_1 = arith.constant 0 : i32
    return %c0_i32, %c0_i32_0 : i32, i32
  }
  func.func @transform_2(%arg0: i32) -> (i32, i32) {
    %c0_i32 = arith.constant 0 : i32
    %c0_i32_0 = arith.constant 0 : i32
    %c0_i32_1 = arith.constant 0 : i32
    return %c0_i32, %c0_i32_0 : i32, i32
  }
  func.func @transform_3(%arg0: i32) -> (i32, i32) {
    %c0_i32 = arith.constant 0 : i32
    %c0_i32_0 = arith.constant 0 : i32
    return %arg0, %c0_i32 : i32, i32
  }
}

</mosaic_0001>

<llo_original>
// kernel: tpu_custom_call.1
$region0: #{tpu_custom_call.1}
  #allocation0 [shape = 'u32[]', space=smem, size = 0x4, offset = 0x4, fixed_abs, tag = 'smem constant byte address 0x4 - core index']
  #allocation1 [shape = 'u32[72,128]{1,0:T(1,128)}', space=vmem, size = 0x9000, scoped, tag = 'internal scratch']
  %s0 = inlined_call_operand.hbm [shape: f32[16,32], index: 0, kind: input, shape index: {}]
  %s1 = inlined_call_operand.hbm [shape: f32[32,32], index: 1, kind: input, shape index: {}]
  %s2 = inlined_call_operand.vmem [shape: f32[1,32], index: 2, kind: input, shape index: {}]
  %s3 = inlined_call_operand.hbm [shape: f32[16,32], index: 3, kind: output, shape index: {}]
  %s4 = sld [smem:[#allocation0]]
  $region30: #{tpu_custom_call.1} parent=0
    _
  %s6 = ssub.s32 1, %s4
  %s7 = scalar_select 0, %s6, %s4
  $region1: #{tpu_custom_call.1} parent=0
    #allocation2 [shape = 'u8[8192]{0}', space=vmem, size = 0x2000, scoped, tag = 'input window, operand 0, single buffered']
    #allocation3 [shape = 's32[1]{0}', space=sflag, size = 0x4, scoped, tag = 'scoped memory for tpu_custom_call.1']
    #allocation4 [shape = 's32[1]{0}', space=sflag, size = 0x4, scoped, tag = 'scoped memory for tpu_custom_call.1']
    #allocation5 [shape = 'u8[16384]{0}', space=vmem, size = 0x4000, scoped, tag = 'input window, operand 1, single buffered']
    #allocation6 [shape = 's32[1]{0}', space=sflag, size = 0x4, scoped, tag = 'scoped memory for tpu_custom_call.1']
    #allocation7 [shape = 'u8[8192]{0}', space=vmem, size = 0x2000, scoped, tag = 'output window, operand 0, single buffered']
    %8 = vsyncpa [#allocation3], 0
    %9 = vsyncpa [#allocation6], 0
    %10 = vsyncpa [#allocation4], 0
    // Predicated region
    $region2: #{tpu_custom_call.1} parent=1 // pred_check
      _
    $region3: #{tpu_custom_call.1} parent=1 // pred_check_branch
      %12 = sbr.rel (0) target = $region5
    $region4: #{tpu_custom_call.1} parent=1 // pred_region
      %14 = vsyncadd [#allocation3], 0
      %s15 = sshll.u32 %s0, 4
      %s16 = int_to_ptr.hbm [resolvable:$true] %s15
      %s17 = sshll.u32 [#allocation2], 4
      %s18 = int_to_ptr.vmem [resolvable:$true] %s17
      %23 = dma.hbm_to_vmem [thread:$0]  %s16, 256, %s18, [#allocation3], 128, 128, 8
    $region5: #{tpu_custom_call.1} parent=1 // pred_fallthru
      _
    // Predicated region
    $region6: #{tpu_custom_call.1} parent=1 // pred_check
      _
    $region7: #{tpu_custom_call.1} parent=1 // pred_check_branch
      %25 = sbr.rel (0) target = $region9
    $region8: #{tpu_custom_call.1} parent=1 // pred_region
      %27 = vsyncadd [#allocation6], 0
      %s28 = sshll.u32 %s1, 4
      %s29 = int_to_ptr.hbm [resolvable:$true] %s28
      %s30 = sshll.u32 [#allocation5], 4
      %s31 = int_to_ptr.vmem [resolvable:$true] %s30
      %36 = dma.hbm_to_vmem [thread:$0]  %s29, 512, %s31, [#allocation6], 128, 128, 8
    $region9: #{tpu_custom_call.1} parent=1 // pred_fallthru
      _
    // Predicated region
    $region10: #{tpu_custom_call.1} parent=1 // pred_check
      _
    $region11: #{tpu_custom_call.1} parent=1 // pred_check_branch
      %38 = sbr.rel (0) target = $region13
    $region12: #{tpu_custom_call.1} parent=1 // pred_region
      _
    $region13: #{tpu_custom_call.1} parent=1 // pred_fallthru
      _
    // Predicated region
    $region14: #{tpu_custom_call.1} parent=1 // pred_check
      _
    $region15: #{tpu_custom_call.1} parent=1 // pred_check_branch
      %40 = sbr.rel (0) target = $region17
    $region16: #{tpu_custom_call.1} parent=1 // pred_region
      %42 = dma.done [#allocation3], 256
    $region17: #{tpu_custom_call.1} parent=1 // pred_fallthru
      _
    // Predicated region
    $region18: #{tpu_custom_call.1} parent=1 // pred_check
      _
    $region19: #{tpu_custom_call.1} parent=1 // pred_check_branch
      %44 = sbr.rel (0) target = $region21
    $region20: #{tpu_custom_call.1} parent=1 // pred_region
      %46 = dma.done [#allocation6], 512
    $region21: #{tpu_custom_call.1} parent=1 // pred_fallthru
      _
    %v47 = vld [vmem:[#allocation2] sm:$0xff]
    %v48 = vld [vmem:[#allocation2 + $0x8] sm:$0xff]
    %v49 = vld [vmem:[#allocation5] sm:$0xff]
    %v50 = vld [vmem:[#allocation5 + $0x8] sm:$0xff]
    %v51 = vld [vmem:[#allocation5 + $0x10] sm:$0xff]
    %v52 = vld [vmem:[#allocation5 + $0x18] sm:$0xff]
    %v53 = vld [vmem:[%s2] sm:$0x1]
    %v55 = vperm.slane %v53, 0
    %vm57 = vcmask 261120
    %v59 = vsel %vm57, %v47, 0
    %v62 = vsel %vm57, %v48, 0
    %64 = vmatpush.msra.mxu0 0.0
    %65 = vmatpush.msra.mxu0 0.0
    %66 = vmatpush.msra.mxu0 0.0
    %67 = vmatpush.msra.mxu0 0.0
    %68 = vmatpush.msra.mxu0 0.0
    %69 = vmatpush.msra.mxu0 0.0
    %70 = vmatpush.msra.mxu0 0.0
    %71 = vmatpush.msra.mxu0 0.0
    %72 = vmatpush.msra.mxu0 0.0
    %73 = vmatpush.msra.mxu0 0.0
    %74 = vmatpush.msra.mxu0 0.0
    %75 = vmatpush.msra.mxu0 0.0
    %76 = vmatpush.msra.mxu0 %v52
    %77 = vmatpush.msra.mxu0 %v51
    %78 = vmatpush.msra.mxu0 %v50
    %79 = vmatpush.msra.mxu0 %v49
    %80 = vmatmul.f32.gmra.mxu0 %v59
    %v81 = vpop.f32.mrf.mxu0
    %v82 = vadd.f32 %v55, %v81
    %83 = vmatmul.f32.gmra.mxu0 %v62
    %v84 = vpop.f32.mrf.mxu0
    %v85 = vadd.f32 %v55, %v84
    %86 = vdwg.mxu0
    %87 = vst.msk [vmem:[#allocation7] sm:$0xff] %vm57, %v82
    %88 = vst.msk [vmem:[#allocation7 + $0x8] sm:$0xff] %vm57, %v85
    // Predicated region
    $region22: #{tpu_custom_call.1} parent=1 // pred_check
      _
    $region23: #{tpu_custom_call.1} parent=1 // pred_check_branch
      %90 = sbr.rel (0) target = $region25
    $region24: #{tpu_custom_call.1} parent=1 // pred_region
      %92 = vsyncadd [#allocation4], 0
      %s93 = sshll.u32 [#allocation7], 4
      %s94 = int_to_ptr.vmem [resolvable:$true] %s93
      %s95 = sshll.u32 %s3, 4
      %s96 = int_to_ptr.hbm [resolvable:$true] %s95
      %101 = dma.vmem_to_hbm [thread:$0]  %s94, 256, %s96, [#allocation4], 128, 128, 8
    $region25: #{tpu_custom_call.1} parent=1 // pred_fallthru
      _
    // Predicated region
    $region26: #{tpu_custom_call.1} parent=1 // pred_check
      _
    $region27: #{tpu_custom_call.1} parent=1 // pred_check_branch
      %103 = sbr.rel (0) target = $region29
    $region28: #{tpu_custom_call.1} parent=1 // pred_region
      %105 = dma.done [#allocation4], 256
    $region29: #{tpu_custom_call.1} parent=1 // pred_fallthru
      _
    %106 = vsyncpa [#allocation3], 1
    %107 = vsyncpa [#allocation6], 1
    %108 = vsyncpa [#allocation4], 1

</llo_original>
